<compile_context>
chip_gen: v7x
topology: tpu7x:2x2x1
jax: 0.10.0
libtpu: 0.0.40
codegen_flags: <defaults>
</compile_context>

<pallas_src>
import numpy as np
import jax
import jax.numpy as jnp
from jax.experimental import pallas as pl
from jax.experimental.pallas import tpu as pltpu


_DENSE_MAX_HW = 4096        # images up to 64x64 use the single dense (kron) matmul.


# ----------------------------- sizing helpers -------------------------------

def _round_up(x, m):
    return ((x + m - 1) // m) * m


def _sublane(itemsize):
    return {1: 32, 2: 16, 4: 8}.get(itemsize, 8)


def _pad2(rows, cols, itemsize):
    """Padded VMEM bytes of a 2-D tile (sublane / lane padding included)."""
    return _round_up(rows, _sublane(itemsize)) * _round_up(cols, 128) * itemsize


def _vmem_limit_bytes():
    """Generation-aware scoped-VMEM request (48 MiB on 64-MiB parts, 96 MiB on 128-MiB)."""
    phys = 64 * 1024 * 1024
    try:
        info = pltpu.get_tpu_info()
        phys = int(getattr(info, "vmem_capacity_bytes", phys))
    except Exception:
        pass
    return int(min(96 * 1024 * 1024, (phys * 3) // 4))


def _pick_rows(n_rows, per_row_bytes, budget_bytes, sublane_mult=8):
    """Row-block size: fit the padded budget, keep blocks >= ~4 MiB, aim for >= 8 steps."""
    cap = max(1, budget_bytes // max(per_row_bytes, 1))
    pipe = -(-n_rows // 8)                                   # target >= 8 grid steps
    floor = max(1, (4 << 20) // max(per_row_bytes, 1))       # but keep blocks >= ~4 MiB
    rb = min(cap, max(pipe, floor), n_rows)
    if rb < n_rows and sublane_mult > 1:
        rb = max(sublane_mult, (rb // sublane_mult) * sublane_mult)
        rb = min(rb, n_rows)
    return max(1, int(rb))


def _pick_s_tile(cin, cout, s, budget_bytes):
    """Spatial tile (multiple of 128) for the 1x1 channel-mix kernel."""
    if s <= 128:
        return s
    per_col = (_round_up(cin, 16) * 2 * 2                    # bf16 input, double buffered
               + _round_up(cout, 16) * (4 * 2 + 4))          # output (<=f32) dbl-buf + f32 acc
    st = budget_bytes // max(per_col, 1)
    st = min(st, 8192, s)
    st = max(128, (st // 128) * 128)
    return int(st)


# --------------------------- operator construction --------------------------

def _downsample_matrix(n_in, resampling_filter):
    """1-D stride-2 FIR downsampling operator (n_in//2, n_in), upfirdn2d semantics."""
    f = np.asarray(resampling_filter, dtype=np.float32)
    fn = f / f.sum()
    ffl = fn[::-1]                      # upfirdn2d flips the filter (true convolution)
    t = f.shape[0]
    pad0 = (t - 1) // 2                 # top/left padding for down=2
    n_out = n_in // 2
    d = np.zeros((n_out, n_in), dtype=np.float32)
    for o in range(n_out):
        for k in range(t):
            i = 2 * o + k - pad0
            if 0 <= i < n_in:
                d[o, i] = ffl[k]
    return d


# ----------------------------- Pallas kernels -------------------------------

def _dense_kernel(x_ref, k_ref, o_ref):
    # x: (rb, H*W) bf16   k: (H*W, Ho*Wo) bf16   o: (rb, Ho*Wo)
    o_ref[...] = jnp.dot(x_ref[...], k_ref[...],
                         preferred_element_type=jnp.float32).astype(o_ref.dtype)


def _dense_fused_kernel(mix_first):
    """Per-image kernel: dense 2-D FIR + fused 1x1 channel mix (no HBM intermediate)."""
    def kernel(x_ref, k_ref, w_ref, o_ref):
        # x: (Cin, H*W) bf16   k: (H*W, Ho*Wo) bf16   w: (Cout, Cin) bf16
        if mix_first:
            t = jnp.dot(w_ref[...], x_ref[...], preferred_element_type=jnp.float32)
            z = jnp.dot(t.astype(jnp.bfloat16), k_ref[...],
                        preferred_element_type=jnp.float32)
        else:
            t = jnp.dot(x_ref[...], k_ref[...], preferred_element_type=jnp.float32)
            z = jnp.dot(w_ref[...], t.astype(jnp.bfloat16),
                        preferred_element_type=jnp.float32)
        o_ref[...] = z.astype(o_ref.dtype)
    return kernel


def _sep_resample_kernel(x_ref, dh_ref, dwt_ref, o_ref):
    # x: (rb, H, W) bf16   dh: (Ho, H) bf16   dwt: (W, Wo) bf16   o: (rb, Ho, Wo)
    # Large-image path only (H*W > _DENSE_MAX_HW).  The batched H-direction matmul is
    # kept for lowering robustness; the dense path handles the regime where it was worst.
    rb, h, w = x_ref.shape
    ho = dh_ref.shape[0]
    wo = dwt_ref.shape[1]
    x = x_ref[...]
    y = jnp.dot(x.reshape(rb * h, w), dwt_ref[...],
                preferred_element_type=jnp.float32)              # (rb*H, Wo) f32
    y = y.reshape(rb, h, wo).astype(jnp.bfloat16)
    dh_b = jnp.broadcast_to(dh_ref[...][None], (rb, ho, h))
    z = jax.lax.dot_general(dh_b, y,
                            dimension_numbers=(((2,), (1,)), ((0,), (0,))),
                            preferred_element_type=jnp.float32)   # (rb, Ho, Wo) f32
    o_ref[...] = z.astype(o_ref.dtype)


def _mix_kernel(x_ref, w_ref, o_ref):
    # x: (Cin, S_tile) bf16   w: (Cout, Cin) bf16   o: (Cout, S_tile)
    o_ref[...] = jnp.dot(w_ref[...], x_ref[...],
                         preferred_element_type=jnp.float32).astype(o_ref.dtype)


# ------------------------------ pallas wrappers ------------------------------

def _dense_resample(x2, k, out_dtype, vlim):
    """x2: (R, H*W) bf16, k: (H*W, Ho*Wo) bf16 -> (R, Ho*Wo)."""
    r, hw = x2.shape
    howo = k.shape[1]
    out_item = jnp.dtype(out_dtype).itemsize
    per_row = (_round_up(hw, 128) * 2 * 2                          # bf16 input, dbl-buf
               + _round_up(howo, 128) * (out_item * 2 + 4))        # output dbl-buf + f32 acc
    budget = max(vlim // 2 - 2 * _pad2(hw, howo, 2), 1 << 20)      # leave room for the operator
    rb = _pick_rows(r, per_row, budget, sublane_mult=8)
    return pl.pallas_call(
        _dense_kernel,
        out_shape=jax.ShapeDtypeStruct((r, howo), out_dtype),
        grid=(pl.cdiv(r, rb),),
        in_specs=[pl.BlockSpec((rb, hw), lambda i: (i, 0)),
                  pl.BlockSpec((hw, howo), lambda i: (0, 0))],
        out_specs=pl.BlockSpec((rb, howo), lambda i: (i, 0)),
        compiler_params=pltpu.CompilerParams(
            dimension_semantics=("parallel",),
            vmem_limit_bytes=vlim),
    )(x2, k)


def _channel_mix(x3, w_mat, out_dtype):
    """x3: (N, Cin, S) bf16, w_mat: (Cout, Cin) bf16 -> (N, Cout, S), tiled over S."""
    n, c, s = x3.shape
    cout = w_mat.shape[0]
    vlim = _vmem_limit_bytes()
    st = _pick_s_tile(c, cout, s, max(vlim // 2, 1 << 20))
    return pl.pallas_call(
        _mix_kernel,
        out_shape=jax.ShapeDtypeStruct((n, cout, s), out_dtype),
        grid=(n, pl.cdiv(s, st)),
        in_specs=[pl.BlockSpec((None, c, st), lambda i, j: (i, 0, j)),
                  pl.BlockSpec((cout, c), lambda i, j: (0, 0))],
        out_specs=pl.BlockSpec((None, cout, st), lambda i, j: (i, 0, j)),
        compiler_params=pltpu.CompilerParams(
            dimension_semantics=("parallel", "parallel"),
            vmem_limit_bytes=vlim),
    )(x3, w_mat)


def _sep_resample(x3, dh, dwt, out_dtype):
    """x3: (R, H, W) bf16 -> (R, Ho, Wo) via separable stride-2 FIR (large images)."""
    r, h, w = x3.shape
    ho, wo = dh.shape[0], dwt.shape[1]
    vlim = _vmem_limit_bytes()
    out_item = jnp.dtype(out_dtype).itemsize
    per_row = (_pad2(h, w, 2) * 2              # bf16 input block, double buffered
               + _pad2(h, wo, 4)               # f32 W-direction intermediate
               + _pad2(ho, h, 2)               # rb-way broadcast of Dh
               + _pad2(ho, wo, 4)              # f32 H-direction result
               + _pad2(ho, wo, out_item) * 2)  # output block, double buffered
    rb = _pick_rows(r, per_row, max(vlim // 2, 1 << 20), sublane_mult=1)
    return pl.pallas_call(
        _sep_resample_kernel,
        out_shape=jax.ShapeDtypeStruct((r, ho, wo), out_dtype),
        grid=(pl.cdiv(r, rb),),
        in_specs=[pl.BlockSpec((rb, h, w), lambda i: (i, 0, 0)),
                  pl.BlockSpec((ho, h), lambda i: (0, 0)),
                  pl.BlockSpec((w, wo), lambda i: (0, 0))],
        out_specs=pl.BlockSpec((rb, ho, wo), lambda i: (i, 0, 0)),
        compiler_params=pltpu.CompilerParams(
            dimension_semantics=("parallel",),
            vmem_limit_bytes=vlim),
    )(x3, dh, dwt)


# --------------------------------- paths -------------------------------------

def _dense_path(xb, resampling_filter, w_mix, out_dtype):
    """Small / medium images: dense kron operator (one lane-dense matmul per block)."""
    n, cin, h, w = xb.shape
    ho, wo = h // 2, w // 2
    hw, howo = h * w, ho * wo
    dh = _downsample_matrix(h, resampling_filter)
    dw = _downsample_matrix(w, resampling_filter)
    k = jnp.asarray(np.kron(dh, dw).T, dtype=jnp.bfloat16)        # (H*W, Ho*Wo), taps exact in bf16
    x2 = xb.reshape(n * cin, hw)
    vlim = _vmem_limit_bytes()

    if w_mix is None:
        # InputChannels == OutputChannels: no LinearLayer, single resample matmul.
        y = _dense_resample(x2, k, out_dtype, vlim)
        return y.reshape(n, cin, ho, wo)

    cout = w_mix.shape[0]
    wb = w_mix.astype(jnp.bfloat16)
    mix_first = (cout * 4 <= cin)   # mix-first only when it clearly reduces HBM bytes

    # Fused per-image kernel (no HBM round trip of the intermediate) when it fits VMEM.
    img_in = _pad2(cin, hw, 2) * 2
    img_mid = _pad2(cout if mix_first else cin, hw if mix_first else howo, 4)
    img_out = _pad2(cout, howo, jnp.dtype(out_dtype).itemsize) * 2
    oper = 2 * _pad2(hw, howo, 2) + 2 * _pad2(cout, cin, 2)
    if img_in + img_mid + img_out + oper <= (vlim * 3) // 4:
        x3 = x2.reshape(n, cin, hw)
        out = pl.pallas_call(
            _dense_fused_kernel(mix_first),
            out_shape=jax.ShapeDtypeStruct((n, cout, howo), out_dtype),
            grid=(n,),
            in_specs=[pl.BlockSpec((None, cin, hw), lambda i: (i, 0, 0)),
                      pl.BlockSpec((hw, howo), lambda i: (0, 0)),
                      pl.BlockSpec((cout, cin), lambda i: (0, 0))],
            out_specs=pl.BlockSpec((None, cout, howo), lambda i: (i, 0, 0)),
            compiler_params=pltpu.CompilerParams(
                dimension_semantics=("parallel",),
                vmem_limit_bytes=vlim),
        )(x3, k, wb)
        return out.reshape(n, cout, ho, wo)

    # Fallback (very large per-image slabs): unfused, still lane-dense / tiled.
    if mix_first:
        xm = _channel_mix(x2.reshape(n, cin, hw), wb, jnp.bfloat16)
        y = _dense_resample(xm.reshape(n * cout, hw), k, out_dtype, vlim)
        return y.reshape(n, cout, ho, wo)
    y = _dense_resample(x2, k, jnp.bfloat16, vlim)
    z = _channel_mix(y.reshape(n, cin, howo), wb, out_dtype)
    return z.reshape(n, cout, ho, wo)


def _separable_path(xb, resampling_filter, w_mix, out_dtype):
    """Large images: separable Dh . X . Dw^T (keeps FLOPs low where dense would blow up)."""
    n, cin, h, w = xb.shape
    ho, wo = h // 2, w // 2
    dh = jnp.asarray(_downsample_matrix(h, resampling_filter), dtype=jnp.bfloat16)     # (Ho, H)
    dwt = jnp.asarray(_downsample_matrix(w, resampling_filter).T, dtype=jnp.bfloat16)  # (W, Wo)

    if w_mix is None:
        y = _sep_resample(xb.reshape(n * cin, h, w), dh, dwt, out_dtype)
        return y.reshape(n, cin, ho, wo)

    cout = w_mix.shape[0]
    wb = w_mix.astype(jnp.bfloat16)
    if cout * 4 <= cin:
        # The 1x1 mix commutes with the per-channel linear resampler; mixing first
        # only pays off when it removes >= 4x of the channels.
        xm = _channel_mix(xb.reshape(n, cin, h * w), wb, jnp.bfloat16)
        y = _sep_resample(xm.reshape(n * cout, h, w), dh, dwt, out_dtype)
        return y.reshape(n, cout, ho, wo)

    y = _sep_resample(xb.reshape(n * cin, h, w), dh, dwt, jnp.bfloat16)
    z = _channel_mix(y.reshape(n, cin, ho * wo), wb, out_dtype)
    return z.reshape(n, cout, ho, wo)


def downsample_layer(x, resampling_filter, w_mix=None):
    """x: (N, Cin, H, W) NCHW. Returns (N, Cout, H//2, W//2) in x.dtype."""
    n, cin, h, w = x.shape
    assert h % 2 == 0 and w % 2 == 0, "stride-2 downsample expects even spatial dims"
    if w_mix is not None and w_mix.ndim == 4:        # accept (Cout, Cin, 1, 1) conv weights
        w_mix = w_mix.reshape(w_mix.shape[0], w_mix.shape[1])
    out_dtype = x.dtype
    xb = x.astype(jnp.bfloat16)
    if h * w <= _DENSE_MAX_HW:
        return _dense_path(xb, resampling_filter, w_mix, out_dtype)
    return _separable_path(xb, resampling_filter, w_mix, out_dtype)


# ------------------------------ reference -----------------------------------

def _reference(x, resampling_filter, w_mix):
    """Pure-JAX f32 reference: depthwise stride-2 FIR + optional 1x1 conv (NCHW)."""
    f = jnp.asarray(resampling_filter, dtype=jnp.float32)
    fn = f / f.sum()
    f2 = jnp.outer(fn, fn)[::-1, ::-1]
    t = f.shape[0]
    pad0, pad1 = (t - 1) // 2, (t - 2) // 2
    cin = x.shape[1]
    filt = jnp.tile(f2[None, None], (cin, 1, 1, 1))
    y = jax.lax.conv_general_dilated(
        x, filt, window_strides=(2, 2),
        padding=((pad0, pad1), (pad0, pad1)),
        feature_group_count=cin,
        dimension_numbers=("NCHW", "OIHW", "NCHW"))
    if w_mix is not None:
        y = jax.lax.conv_general_dilated(
            y, w_mix[:, :, None, None], (1, 1), "VALID",
            dimension_numbers=("NCHW", "OIHW", "NCHW"))
    return y


if __name__ == "__main__":
    key = jax.random.PRNGKey(0)
    kx, kw1, kw2, kw3 = jax.random.split(key, 4)
    resampling_filter = [1, 2, 1]

    # Case 1: Cout > Cin (LinearLayer present) -> dense path, fused resample + 1x1 mix.
    n, cin, h, w = 2, 4, 16, 16
    x = jax.random.normal(kx, (n, cin, h, w), dtype=jnp.float32)
    cout = 8
    w_mix = jax.random.normal(kw1, (cout, cin), dtype=jnp.float32) / np.sqrt(cin)  # MSR init, bias=False
    out1 = jax.block_until_ready(downsample_layer(x, resampling_filter, w_mix))
    ref1 = _reference(x, resampling_filter, w_mix)
    np.testing.assert_allclose(np.asarray(out1), np.asarray(ref1), rtol=2e-2, atol=2e-2)
    assert out1.shape == (n, cout, h // 2, w // 2)

    # Case 2: Cin == Cout -> no LinearLayer, single dense resample matmul.
    out2 = jax.block_until_ready(downsample_layer(x, resampling_filter, None))
    ref2 = _reference(x, resampling_filter, None)
    np.testing.assert_allclose(np.asarray(out2), np.asarray(ref2), rtol=2e-2, atol=2e-2)
    assert out2.shape == (n, cin, h // 2, w // 2)

    # Case 3: strongly channel-reducing LinearLayer (Cout*4 <= Cin) -> fused dense, mix first.
    x3 = jax.random.normal(kx, (n, 16, h, w), dtype=jnp.float32)
    w_mix3 = jax.random.normal(kw2, (4, 16), dtype=jnp.float32) / np.sqrt(16.0)
    out3 = jax.block_until_ready(downsample_layer(x3, resampling_filter, w_mix3))
    ref3 = _reference(x3, resampling_filter, w_mix3)
    np.testing.assert_allclose(np.asarray(out3), np.asarray(ref3), rtol=2e-2, atol=2e-2)
    assert out3.shape == (n, 4, h // 2, w // 2)

    # Case 4: large image -> separable path (flat W matmul + H matmul) + S-tiled 1x1 mix.
    n4, cin4, cout4, h4, w4 = 1, 4, 6, 128, 128
    x4 = jax.random.normal(kx, (n4, cin4, h4, w4), dtype=jnp.float32)
    w_mix4 = jax.random.normal(kw3, (cout4, cin4), dtype=jnp.float32) / np.sqrt(cin4)
    out4 = jax.block_until_ready(downsample_layer(x4, resampling_filter, w_mix4))
    ref4 = _reference(x4, resampling_filter, w_mix4)
    np.testing.assert_allclose(np.asarray(out4), np.asarray(ref4), rtol=2e-2, atol=2e-2)
    assert out4.shape == (n4, cout4, h4 // 2, w4 // 2)

    print("KERNEL_OK")
</pallas_src>

<mosaic_0001>
module attributes {stable_mosaic.version = 11 : i64} {
  func.func @kernel(%arg0: i32, %arg1: memref<1x4x256xbf16, #tpu.memory_space<vmem>>, %arg2: memref<256x64xbf16, #tpu.memory_space<vmem>>, %arg3: memref<8x4xbf16, #tpu.memory_space<vmem>>, %arg4: memref<1x8x64xf32, #tpu.memory_space<vmem>>) attributes {dimension_semantics = [#tpu.dimension_semantics<parallel>], iteration_bounds = array<i64: 2>, scalar_prefetch = 0 : i64, scratch_operands = 0 : i64, tpu.core_type = #tpu.core_type<tc>, window_params = [{transform_indices = @transform_0, window_bounds = array<i64: 1, 4, 256>}, {pipeline_mode = #tpu.pipeline_mode<synchronous>, transform_indices = @transform_1, window_bounds = array<i64: 256, 64>}, {pipeline_mode = #tpu.pipeline_mode<synchronous>, transform_indices = @transform_2, window_bounds = array<i64: 8, 4>}, {transform_indices = @transform_3, window_bounds = array<i64: 1, 8, 64>}]} {
    %c0 = arith.constant 0 : index
    %c0_0 = arith.constant 0 : index
    %c0_1 = arith.constant 0 : index
    %0 = vector.load %arg1[%c0, %c0_0, %c0_1] : memref<1x4x256xbf16, #tpu.memory_space<vmem>>, vector<1x4x256xbf16>
    %1 = vector.shape_cast %0 : vector<1x4x256xbf16> to vector<4x256xbf16>
    %c0_2 = arith.constant 0 : index
    %c0_3 = arith.constant 0 : index
    %2 = vector.load %arg2[%c0_2, %c0_3] : memref<256x64xbf16, #tpu.memory_space<vmem>>, vector<256x64xbf16>
    %cst = arith.constant dense<0.000000e+00> : vector<4x64xf32>
    %3 = tpu.matmul %1, %2, %cst {dimension_numbers = #tpu.dot_dimension_numbers<[1], [0], [0], [1], [0, 0, 1, 1], [], []>} : vector<4x256xbf16>, vector<256x64xbf16>, vector<4x64xf32> -> vector<4x64xf32>
    %c0_4 = arith.constant 0 : index
    %c0_5 = arith.constant 0 : index
    %4 = vector.load %arg3[%c0_4, %c0_5] : memref<8x4xbf16, #tpu.memory_space<vmem>>, vector<8x4xbf16>
    %5 = arith.truncf %3 : vector<4x64xf32> to vector<4x64xbf16>
    %cst_6 = arith.constant dense<0.000000e+00> : vector<8x64xf32>
    %6 = tpu.matmul %4, %5, %cst_6 {dimension_numbers = #tpu.dot_dimension_numbers<[1], [0], [0], [1], [0, 0, 1, 1], [], []>} : vector<8x4xbf16>, vector<4x64xbf16>, vector<8x64xf32> -> vector<8x64xf32>
    %c0_7 = arith.constant 0 : index
    %c0_8 = arith.constant 0 : index
    %c0_9 = arith.constant 0 : index
    %7 = vector.load %arg4[%c0_7, %c0_8, %c0_9] : memref<1x8x64xf32, #tpu.memory_space<vmem>>, vector<1x8x64xf32>
    %8 = vector.shape_cast %7 : vector<1x8x64xf32> to vector<8x64xf32>
    %9 = vector.shape_cast %6 : vector<8x64xf32> to vector<1x8x64xf32>
    tpu.vector_store %arg4[%c0_7, %c0_8, %c0_9], %9 {strides = array<i32>} : memref<1x8x64xf32, #tpu.memory_space<vmem>>, vector<1x8x64xf32>,
    return
  }
  func.func @transform_0(%arg0: i32) -> (i32, i32, i32) {
    %c0_i32 = arith.constant 0 : i32
    %c0_i32_0 = arith.constant 0 : i32
    %c0_i32_1 = arith.constant 0 : i32
    return %arg0, %c0_i32, %c0_i32_0 : i32, i32, i32
  }
  func.func @transform_1(%arg0: i32) -> (i32, i32) {
    %c0_i32 = arith.constant 0 : i32
    %c0_i32_0 = arith.constant 0 : i32
    %c0_i32_1 = arith.constant 0 : i32
    return %c0_i32, %c0_i32_0 : i32, i32
  }
  func.func @transform_2(%arg0: i32) -> (i32, i32) {
    %c0_i32 = arith.constant 0 : i32
    %c0_i32_0 = arith.constant 0 : i32
    %c0_i32_1 = arith.constant 0 : i32
    return %c0_i32, %c0_i32_0 : i32, i32
  }
  func.func @transform_3(%arg0: i32) -> (i32, i32, i32) {
    %c0_i32 = arith.constant 0 : i32
    %c0_i32_0 = arith.constant 0 : i32
    %c0_i32_1 = arith.constant 0 : i32
    return %arg0, %c0_i32, %c0_i32_0 : i32, i32, i32
  }
}

</mosaic_0001>

<llo_original>
// kernel: tpu_custom_call.1
$region0: #{tpu_custom_call.1}
  #allocation0 [shape = 'u32[]', space=smem, size = 0x4, offset = 0x4, fixed_abs, tag = 'smem constant byte address 0x4 - core index']
  #allocation1 [shape = 'u32[144,128]{1,0:T(1,128)}', space=vmem, size = 0x12000, scoped, tag = 'internal scratch']
  %s0 = inlined_call_operand.vmem [shape: bf16[2,4,256], index: 0, kind: input, shape index: {}]
  %s1 = inlined_call_operand.vmem [shape: bf16[256,64], index: 1, kind: input, shape index: {}]
  %s2 = inlined_call_operand.vmem [shape: bf16[8,4], index: 2, kind: input, shape index: {}]
  %s3 = inlined_call_operand.hbm [shape: f32[2,8,64], index: 3, kind: output, shape index: {}]
  %s4 = sld [smem:[#allocation0]]
  $region45: #{tpu_custom_call.1} parent=0
    _
  %s6 = ssub.s32 1, %s4
  %s7 = scalar_select 0, %s6, %s4
  $region1: #{tpu_custom_call.1} parent=0
    #allocation2 [shape = 'u8[8192]{0}', space=vmem, size = 0x2000, scoped, tag = 'output window, operand 0']
    #allocation3 [shape = 's32[2]{0}', space=sflag, size = 0x8, scoped, tag = 'scoped memory for tpu_custom_call.1']
    %8 = vsyncpa [#allocation3], 0
    %s9 = scalar_lea.sflag [#allocation3], 1
    %10 = vsyncpa %s9, 0
    loop: start=0, step=1, limit=4
    $region2: #{tpu_custom_call.1} parent=1 // loop_pre_header
      _
    $region3: #{tpu_custom_call.1} parent=1 // loop_header
      %s12 = sphi 0, %s16
      %p13 = scmp.ge.s32.totalorder %s12, 4
      %s22 = sphi 0, %s24
      %s25 = sphi 0, %s22
      %s26 = sphi 0, %s25
      %s42 = sphi 0, %s26
      %s46 = sphi 0, %s46
      %s48 = sphi 0, %s46
      %s49 = sphi 0, %s48
      %s63 = sphi 0, %s49
      %s67 = sphi 0, %s67
      %s69 = sphi 0, %s67
      %s70 = sphi 0, %s69
      %s84 = sphi 0, %s70
      %s90 = sphi 0, %s92
      %s93 = sphi 0, %s90
      %s94 = sphi 0, %s93
      %s110 = sphi 0, %s94
    $region4: #{tpu_custom_call.1} parent=1 // loop_header_branch
      %15 = sbr.rel (%p13) target = $region8
    $region5: #{tpu_custom_call.1} parent=1 // loop_body
      %s17 = ssub.s32 %s12, 1
      %s18 = ssub.s32 %s12, 2
      %s19 = sadd.s32 %s12, 1
      %s20 = ssub.s32 %s12, %s19
      %p21 = scmp.eq.s32.totalorder %s20, 0
      %s23 = sadd.s32 %s22, 1
      %s24 = scalar_select %p21, %s22, %s23
      %p27 = pneg %p21
      %p28 = scmp.eq.s32.totalorder %s12, 1
      %p29 = por %p27, %p28
      %p30 = scmp.ne.s32.totalorder %s22, %s25
      %p31 = scmp.eq.s32.totalorder %s12, 0
      %p32 = por %p30, %p31
      %p33 = scmp.ne.s32.totalorder %s22, %s25
      %p34 = scmp.eq.s32.totalorder %s17, 1
      %p35 = por %p33, %p34
      %p36 = scmp.ne.s32.totalorder %s25, %s26
      %p37 = scmp.eq.s32.totalorder %s17, 0
      %p38 = por %p36, %p37
      %p39 = scmp.ne.s32.totalorder %s25, %s26
      %p40 = scmp.eq.s32.totalorder %s18, 1
      %p41 = por %p39, %p40
      %p43 = scmp.ne.s32.totalorder %s26, %s42
      %p44 = scmp.eq.s32.totalorder %s18, 0
      %p45 = por %p43, %p44
      %s47 = sadd.s32 %s46, 1
      %p50 = scmp.eq.s32.totalorder %s12, 1
      %p51 = scmp.ne.s32.totalorder %s46, %s48
      %p52 = scmp.eq.s32.totalorder %s12, 0
      %p53 = por %p51, %p52
      %p54 = scmp.ne.s32.totalorder %s46, %s48
      %p55 = scmp.eq.s32.totalorder %s17, 1
      %p56 = por %p54, %p55
      %p57 = scmp.ne.s32.totalorder %s48, %s49
      %p58 = scmp.eq.s32.totalorder %s17, 0
      %p59 = por %p57, %p58
      %p60 = scmp.ne.s32.totalorder %s48, %s49
      %p61 = scmp.eq.s32.totalorder %s18, 1
      %p62 = por %p60, %p61
      %p64 = scmp.ne.s32.totalorder %s49, %s63
      %p65 = scmp.eq.s32.totalorder %s18, 0
      %p66 = por %p64, %p65
      %s68 = sadd.s32 %s67, 1
      %p71 = scmp.eq.s32.totalorder %s12, 1
      %p72 = scmp.ne.s32.totalorder %s67, %s69
      %p73 = scmp.eq.s32.totalorder %s12, 0
      %p74 = por %p72, %p73
      %p75 = scmp.ne.s32.totalorder %s67, %s69
      %p76 = scmp.eq.s32.totalorder %s17, 1
      %p77 = por %p75, %p76
      %p78 = scmp.ne.s32.totalorder %s69, %s70
      %p79 = scmp.eq.s32.totalorder %s17, 0
      %p80 = por %p78, %p79
      %p81 = scmp.ne.s32.totalorder %s69, %s70
      %p82 = scmp.eq.s32.totalorder %s18, 1
      %p83 = por %p81, %p82
      %p85 = scmp.ne.s32.totalorder %s70, %s84
      %p86 = scmp.eq.s32.totalorder %s18, 0
      %p87 = por %p85, %p86
      %s88 = ssub.s32 %s12, %s19
      %p89 = scmp.eq.s32.totalorder %s88, 0
      %s91 = sadd.s32 %s90, 1
      %s92 = scalar_select %p89, %s90, %s91
      %p95 = pneg %p89
      %p96 = scmp.eq.s32.totalorder %s12, 1
      %p97 = por %p95, %p96
      %p98 = scmp.ne.s32.totalorder %s90, %s93
      %p99 = scmp.eq.s32.totalorder %s12, 0
      %p100 = por %p98, %p99
      %p101 = scmp.ne.s32.totalorder %s90, %s93
      %p102 = scmp.eq.s32.totalorder %s17, 1
      %p103 = por %p101, %p102
      %p104 = scmp.ne.s32.totalorder %s93, %s94
      %p105 = scmp.eq.s32.totalorder %s17, 0
      %p106 = por %p104, %p105
      %p107 = scmp.ne.s32.totalorder %s93, %s94
      %p108 = scmp.eq.s32.totalorder %s18, 1
      %p109 = por %p107, %p108
      %p111 = scmp.ne.s32.totalorder %s94, %s110
      %p112 = scmp.eq.s32.totalorder %s18, 0
      %p113 = por %p111, %p112
      %p114 = scmp.le.s32.totalorder 1, %s12
      %p115 = scmp.lt.s32.totalorder %s12, 3
      %p116 = pnand %p114, %p115
      %p117 = pneg %p116
      // Predicated region
      $region9: #{tpu_custom_call.1} parent=5 // pred_check
        _
      $region10: #{tpu_custom_call.1} parent=5 // pred_check_branch
        %119 = sbr.rel (%p116) target = $region12
      $region11: #{tpu_custom_call.1} parent=5 // pred_region
        %s120 = ssub.s32 %s12, 1
        // Predicated region
        $region13: #{tpu_custom_call.1} parent=11 // pred_check
          %p121 = pneg %p59
        $region14: #{tpu_custom_call.1} parent=11 // pred_check_branch
          %123 = sbr.rel (%p121) target = $region16
        $region15: #{tpu_custom_call.1} parent=11 // pred_region
          _
        $region16: #{tpu_custom_call.1} parent=11 // pred_fallthru
          _
        // Predicated region
        $region17: #{tpu_custom_call.1} parent=11 // pred_check
          %p124 = pneg %p80
        $region18: #{tpu_custom_call.1} parent=11 // pred_check_branch
          %126 = sbr.rel (%p124) target = $region20
        $region19: #{tpu_custom_call.1} parent=11 // pred_region
          _
        $region20: #{tpu_custom_call.1} parent=11 // pred_fallthru
          _
      $region12: #{tpu_custom_call.1} parent=5 // pred_fallthru
        _
      %p127 = scmp.lt.s32.totalorder %s12, 2
      // Predicated region
      $region21: #{tpu_custom_call.1} parent=5 // pred_check
        %p128 = pneg %p127
      $region22: #{tpu_custom_call.1} parent=5 // pred_check_branch
        %130 = sbr.rel (%p128) target = $region24
      $region23: #{tpu_custom_call.1} parent=5 // pred_region
        // Predicated region
        $region25: #{tpu_custom_call.1} parent=23 // pred_check
          %p131 = pneg %p32
        $region26: #{tpu_custom_call.1} parent=23 // pred_check_branch
          %133 = sbr.rel (%p131) target = $region28
        $region27: #{tpu_custom_call.1} parent=23 // pred_region
          %p134 = scmp.lt.s32.totalorder %s12, 1
          %s135 = scalar_select %p134, %s12, 1
          %s136 = smul.addr %s135, 2
          %s137 = smul.addr %s136, 2
          %s138 = scalar_lea.vmem %s0, %s137
        $region28: #{tpu_custom_call.1} parent=23 // pred_fallthru
          _
      $region24: #{tpu_custom_call.1} parent=5 // pred_fallthru
        _
      %p139 = scmp.le.s32.totalorder 1, %s12
      %p140 = scmp.lt.s32.totalorder %s12, 3
      %p141 = pnand %p139, %p140
      %p142 = pneg %p141
      // Predicated region
      $region29: #{tpu_custom_call.1} parent=5 // pred_check
        _
      $region30: #{tpu_custom_call.1} parent=5 // pred_check_branch
        %144 = sbr.rel (%p141) target = $region32
      $region31: #{tpu_custom_call.1} parent=5 // pred_region
        %s145 = ssub.s32 %s12, 1
        %p146 = scmp.lt.s32.totalorder %s17, 1
        %s147 = scalar_select %p146, %s17, 1
        %s148 = smul.addr %s147, 2
        %s149 = smul.addr %s148, 2
        %s150 = scalar_lea.vmem %s0, %s149
        %p151 = pneg %p38
        %p152 = pneg %p35
        %p153 = pneg %p59
        %p154 = pneg %p56
        %p155 = pneg %p80
        %p156 = pneg %p77
        %p157 = pneg %p106
        %p158 = pneg %p103
        %s159 = sand.u32 %s93, 1
        %s160 = scalar_lea.sflag [#allocation3], %s159
        %s161 = sand.u32 %s93, 1
        %s162 = smul.addr %s161, 8
        %s163 = scalar_lea.vmem [#allocation2], %s162
        %p164 = scmp.lt.s32.totalorder %s17, 1
        %s165 = scalar_select %p164, %s17, 1
        %s166 = smul.addr %s165, 2
        %s167 = smul.addr %s166, 2
        %s168 = scalar_lea.vmem %s0, %s167
        %v170 = vld [vmem:[%s168] sm:$0xf]
        %v171 = vld [vmem:[%s1] sm:$0xf]
        %v172 = vld [vmem:[%s1 + $0x4] sm:$0xf]
        %v173 = vld [vmem:[%s1 + $0x8] sm:$0xf]
        %v174 = vld [vmem:[%s1 + $0xc] sm:$0xf]
        %v175 = vld [vmem:[%s1 + $0x10] sm:$0xf]
        %v176 = vld [vmem:[%s1 + $0x14] sm:$0xf]
        %v177 = vld [vmem:[%s1 + $0x18] sm:$0xf]
        %v178 = vld [vmem:[%s1 + $0x1c] sm:$0xf]
        %v179 = vld [vmem:[%s1 + $0x20] sm:$0xf]
        %v180 = vld [vmem:[%s1 + $0x24] sm:$0xf]
        %v181 = vld [vmem:[%s1 + $0x28] sm:$0xf]
        %v182 = vld [vmem:[%s1 + $0x2c] sm:$0xf]
        %v183 = vld [vmem:[%s1 + $0x30] sm:$0xf]
        %v184 = vld [vmem:[%s1 + $0x34] sm:$0xf]
        %v185 = vld [vmem:[%s1 + $0x38] sm:$0xf]
        %v186 = vld [vmem:[%s1 + $0x3c] sm:$0xf]
        %v187 = vld [vmem:[%s1 + $0x40] sm:$0xf]
        %v188 = vld [vmem:[%s1 + $0x44] sm:$0xf]
        %v189 = vld [vmem:[%s1 + $0x48] sm:$0xf]
        %v190 = vld [vmem:[%s1 + $0x4c] sm:$0xf]
        %v191 = vld [vmem:[%s1 + $0x50] sm:$0xf]
        %v192 = vld [vmem:[%s1 + $0x54] sm:$0xf]
        %v193 = vld [vmem:[%s1 + $0x58] sm:$0xf]
        %v194 = vld [vmem:[%s1 + $0x5c] sm:$0xf]
        %v195 = vld [vmem:[%s1 + $0x60] sm:$0xf]
        %v196 = vld [vmem:[%s1 + $0x64] sm:$0xf]
        %v197 = vld [vmem:[%s1 + $0x68] sm:$0xf]
        %v198 = vld [vmem:[%s1 + $0x6c] sm:$0xf]
        %v199 = vld [vmem:[%s1 + $0x70] sm:$0xf]
        %v200 = vld [vmem:[%s1 + $0x74] sm:$0xf]
        %v201 = vld [vmem:[%s1 + $0x78] sm:$0xf]
        %v202 = vld [vmem:[%s1 + $0x7c] sm:$0xf]
        %v205 = vunpack.c.l.s4 1983009808
        %v206 = vunpack.c.0.s8 %v205
        %v207 = vlaneseq
        %v208 = vshrl.u32 %v207, 7
        %v209 = vsub.s32 %v206, %v208
        %v210 = vrot.slane %v170, %v209
        %v211 = vcombine.high %v210, %v210
        %v246 = vunpack.c.l.b16 %v171
        %v247 = vunpack.c.l.b16 %v172
        %v248 = vunpack.c.l.b16 %v173
        %v249 = vunpack.c.l.b16 %v174
        %v250 = vunpack.c.l.b16 %v175
        %v251 = vunpack.c.l.b16 %v176
        %v252 = vunpack.c.l.b16 %v177
        %v253 = vunpack.c.l.b16 %v178
        %v254 = vunpack.c.l.b16 %v179
        %v255 = vunpack.c.l.b16 %v180
        %v256 = vunpack.c.l.b16 %v181
        %v257 = vunpack.c.l.b16 %v182
        %v258 = vunpack.c.l.b16 %v183
        %v259 = vunpack.c.l.b16 %v184
        %v260 = vunpack.c.l.b16 %v185
        %v261 = vunpack.c.l.b16 %v186
        %v262 = vunpack.c.l.b16 %v187
        %v263 = vunpack.c.l.b16 %v188
        %v264 = vunpack.c.l.b16 %v189
        %v265 = vunpack.c.l.b16 %v190
        %v266 = vunpack.c.l.b16 %v191
        %v267 = vunpack.c.l.b16 %v192
        %v268 = vunpack.c.l.b16 %v193
        %v269 = vunpack.c.l.b16 %v194
        %v270 = vunpack.c.l.b16 %v195
        %v271 = vunpack.c.l.b16 %v196
        %v272 = vunpack.c.l.b16 %v197
        %v273 = vunpack.c.l.b16 %v198
        %v274 = vunpack.c.l.b16 %v199
        %v275 = vunpack.c.l.b16 %v200
        %v276 = vunpack.c.l.b16 %v201
        %v277 = vunpack.c.l.b16 %v202
        %v278 = vpack.c.b16 %v247, %v246
        %v279 = vpack.c.b16 %v249, %v248
        %v280 = vpack.c.b16 %v251, %v250
        %v281 = vpack.c.b16 %v253, %v252
        %v282 = vpack.c.b16 %v255, %v254
        %v283 = vpack.c.b16 %v257, %v256
        %v284 = vpack.c.b16 %v259, %v258
        %v285 = vpack.c.b16 %v261, %v260
        %v286 = vpack.c.b16 %v263, %v262
        %v287 = vpack.c.b16 %v265, %v264
        %v288 = vpack.c.b16 %v267, %v266
        %v289 = vpack.c.b16 %v269, %v268
        %v290 = vpack.c.b16 %v271, %v270
        %v291 = vpack.c.b16 %v273, %v272
        %v292 = vpack.c.b16 %v275, %v274
        %v293 = vpack.c.b16 %v277, %v276
        %310 = vmatprep.subr.bf16.mxu0 0
        %311 = vmatpush1.bf16.msra.mxu0 %v278
        %312 = vmatprep.subr.bf16.mxu0 0
        %313 = vmatpush1.bf16.msra.mxu0 %v279
        %314 = vmatprep.subr.bf16.mxu0 0
        %315 = vmatpush1.bf16.msra.mxu0 %v280
        %316 = vmatprep.subr.bf16.mxu0 0
        %317 = vmatpush1.bf16.msra.mxu0 %v281
        %318 = vmatprep.subr.bf16.mxu0 0
        %319 = vmatpush1.bf16.msra.mxu0 %v282
        %320 = vmatprep.subr.bf16.mxu0 0
        %321 = vmatpush1.bf16.msra.mxu0 %v283
        %322 = vmatprep.subr.bf16.mxu0 0
        %323 = vmatpush1.bf16.msra.mxu0 %v284
        %324 = vmatprep.subr.bf16.mxu0 0
        %325 = vmatpush1.bf16.msra.mxu0 %v285
        %326 = vmatprep.subr.bf16.mxu0 0
        %327 = vmatpush1.bf16.msra.mxu0 %v286
        %328 = vmatprep.subr.bf16.mxu0 0
        %329 = vmatpush1.bf16.msra.mxu0 %v287
        %330 = vmatprep.subr.bf16.mxu0 0
        %331 = vmatpush1.bf16.msra.mxu0 %v288
        %332 = vmatprep.subr.bf16.mxu0 0
        %333 = vmatpush1.bf16.msra.mxu0 %v289
        %334 = vmatprep.subr.bf16.mxu0 0
        %335 = vmatpush1.bf16.msra.mxu0 %v290
        %336 = vmatprep.subr.bf16.mxu0 0
        %337 = vmatpush1.bf16.msra.mxu0 %v291
        %338 = vmatprep.subr.bf16.mxu0 0
        %339 = vmatpush1.bf16.msra.mxu0 %v292
        %340 = vmatprep.subr.bf16.mxu0 0
        %341 = vmatpush1.bf16.msra.mxu0 %v293
        %342 = vmatprep.mubr.bf16.mxu0 %v211
        %343 = vmatmul.mubr.bf16.gmra.mrb[0].mxu0 %v210
        %v344 = vpop.f32.mrb[0].mxu0
        %v345 = vadd.f32 0.0, %v344
        %v346 = vpop.f32.mrb[0].mxu0
        %v347 = vpop.f32.mrb[0].mxu0
        %v348 = vpop.f32.mrb[0].mxu0
        %349 = vdwg.mxu0
        %v350 = vld [vmem:[%s2] sm:$0xf]
        %v351 = vpack.c.bf16 %v345, %v345
        %vm352 = vcmask 31744
        %v354 = vsel %vm352, %v350, 0
        %vm356 = vcmask 1041408
        %v358 = vsel %vm356, %v351, 0
        %360 = vmatprep.subr.bf16.mxu0 0
        %361 = vmatpush1.bf16.msra.mxu0 %v358
        %362 = vmatprep.subr.bf16.mxu0 0
        %363 = vmatpush1.bf16.msra.mxu0 0
        %364 = vmatprep.subr.bf16.mxu0 0
        %365 = vmatpush1.bf16.msra.mxu0 0
        %366 = vmatprep.subr.bf16.mxu0 0
        %367 = vmatpush1.bf16.msra.mxu0 0
        %368 = vmatprep.subr.bf16.mxu0 0
        %369 = vmatpush1.bf16.msra.mxu0 0
        %370 = vmatprep.subr.bf16.mxu0 0
        %371 = vmatpush1.bf16.msra.mxu0 0
        %372 = vmatprep.subr.bf16.mxu0 0
        %373 = vmatpush1.bf16.msra.mxu0 0
        %374 = vmatprep.subr.bf16.mxu0 0
        %375 = vmatpush1.bf16.msra.mxu0 0
        %376 = vmatprep.subr.bf16.mxu0 0
        %377 = vmatpush1.bf16.msra.mxu0 0
        %378 = vmatprep.subr.bf16.mxu0 0
        %379 = vmatpush1.bf16.msra.mxu0 0
        %380 = vmatprep.subr.bf16.mxu0 0
        %381 = vmatpush1.bf16.msra.mxu0 0
        %382 = vmatprep.subr.bf16.mxu0 0
        %383 = vmatpush1.bf16.msra.mxu0 0
        %384 = vmatprep.subr.bf16.mxu0 0
        %385 = vmatpush1.bf16.msra.mxu0 0
        %386 = vmatprep.subr.bf16.mxu0 0
        %387 = vmatpush1.bf16.msra.mxu0 0
        %388 = vmatprep.subr.bf16.mxu0 0
        %389 = vmatpush1.bf16.msra.mxu0 0
        %390 = vmatprep.subr.bf16.mxu0 0
        %391 = vmatpush1.bf16.msra.mxu0 0
        %392 = vmatprep.mubr.bf16.mxu0 0
        %393 = vmatmul.mubr.bf16.gmra.mrb[0].mxu0 %v354
        %v394 = vpop.f32.mrb[0].mxu0
        %v395 = vadd.f32 0.0, %v394
        %v396 = vpop.f32.mrb[0].mxu0
        %v397 = vpop.f32.mrb[0].mxu0
        %v398 = vpop.f32.mrb[0].mxu0
        %399 = vdwg.mxu0
        %vm400 = vcmask 523264
        %401 = vst.msk [vmem:[%s163] sm:$0xff] %vm400, %v395
        %s402 = sand.u32 %s93, 1
        %s403 = scalar_lea.sflag [#allocation3], %s402
        %s404 = sand.u32 %s93, 1
        %s405 = smul.addr %s404, 8
        %s406 = scalar_lea.vmem [#allocation2], %s405
        // Predicated region
        $region33: #{tpu_custom_call.1} parent=31 // pred_check
          %p407 = pneg %p103
        $region34: #{tpu_custom_call.1} parent=31 // pred_check_branch
          %409 = sbr.rel (%p407) target = $region36
        $region35: #{tpu_custom_call.1} parent=31 // pred_region
          %s411 = ssub.s32 128, 128
          %412 = vsyncadd %s403, %s411
          %s413 = smul.addr %s17, 128
          %s414 = scalar_lea.hbm %s3, %s413
          %s416 = sshll.u32 %s406, 4
          %s417 = int_to_ptr.vmem [resolvable:$true] %s416
          %419 = dma.vmem_to_hbm [thread:$0]  %s417, 128, %s414, %s403
        $region36: #{tpu_custom_call.1} parent=31 // pred_fallthru
          _
      $region32: #{tpu_custom_call.1} parent=5 // pred_fallthru
        _
      %p420 = scmp.le.s32.totalorder 2, %s12
      // Predicated region
      $region37: #{tpu_custom_call.1} parent=5 // pred_check
        %p421 = pneg %p420
      $region38: #{tpu_custom_call.1} parent=5 // pred_check_branch
        %423 = sbr.rel (%p421) target = $region40
      $region39: #{tpu_custom_call.1} parent=5 // pred_region
        %s424 = ssub.s32 %s12, 2
        // Predicated region
        $region41: #{tpu_custom_call.1} parent=39 // pred_check
          %p425 = pneg %p109
        $region42: #{tpu_custom_call.1} parent=39 // pred_check_branch
          %427 = sbr.rel (%p425) target = $region44
        $region43: #{tpu_custom_call.1} parent=39 // pred_region
          %s428 = sand.u32 %s94, 1
          %s429 = scalar_lea.sflag [#allocation3], %s428
          %s430 = sand.u32 %s94, 1
          %s431 = smul.addr %s430, 8
          %s432 = scalar_lea.vmem [#allocation2], %s431
          %433 = dma.done %s429, 128
        $region44: #{tpu_custom_call.1} parent=39 // pred_fallthru
          _
      $region40: #{tpu_custom_call.1} parent=5 // pred_fallthru
        _
    $region6: #{tpu_custom_call.1} parent=1 // loop_footer
      %s16 = sadd.s32 1, %s12
    $region7: #{tpu_custom_call.1} parent=1 // loop_footer_branch
      %11 = sbr.rel target = $region3
    $region8: #{tpu_custom_call.1} parent=1 // loop_exit
      _
    %434 = vsyncpa [#allocation3], 1
    %s435 = scalar_lea.sflag [#allocation3], 1
    %436 = vsyncpa %s435, 1

</llo_original>
